<compile_context>
chip_gen: v6e
topology: v6e:2x2x1
jax: 0.10.0
libtpu: 0.0.40
codegen_flags: <defaults>
</compile_context>

<pallas_src>
import numpy as np
import jax
import jax.numpy as jnp
from jax import lax
from jax.experimental import pallas as pl
from jax.experimental.pallas import tpu as pltpu


def _round_up(x: int, m: int) -> int:
    return ((x + m - 1) // m) * m


def _pil_bilinear_weights(in_size: int, out_size: int) -> np.ndarray:
    """Dense (out_size, in_size) PIL BILINEAR resampling matrix (float coeffs)."""
    # TODO(synk): PIL quantizes coefficients to 8-bit fixed point for uint8
    # images; float precision is used here (exact for float / "F" mode images).
    scale = in_size / out_size
    filterscale = max(scale, 1.0)
    support = 1.0 * filterscale  # bilinear (triangle) filter support == 1
    A = np.zeros((out_size, in_size), dtype=np.float64)
    for i in range(out_size):
        center = (i + 0.5) * scale
        xmin = int(max(0.0, np.floor(center - support)))
        xmax = int(min(in_size, np.ceil(center + support)))
        if xmax <= xmin:
            xmin = min(max(xmin, 0), in_size - 1)
            xmax = xmin + 1
        w = np.empty(xmax - xmin, dtype=np.float64)
        for k, j in enumerate(range(xmin, xmax)):
            x = (j - center + 0.5) / filterscale
            w[k] = max(0.0, 1.0 - abs(x))  # triangle filter
        s = w.sum()
        if s > 0.0:
            w /= s
        A[i, xmin:xmax] = w
    return A.astype(np.float32)


def _vmem_capacity_bytes() -> int:
    """Per-core VMEM capacity (falls back to 128 MiB if the query is unavailable)."""
    try:
        return int(pltpu.get_tpu_info().vmem_capacity_bytes)
    except Exception:
        return 128 << 20


def _choose_tn(n: int, plane_bytes: int, budget_bytes: int,
               prefer_even_steps: bool) -> int:
    """Largest divisor of n whose block fits the budget.

    On 2-TensorCore parts (v7x) prefer an even number of grid steps so the
    'parallel' axis shards evenly across cores; otherwise just keep >=2 steps
    for pipeline depth when possible."""
    divisors = [d for d in range(1, n + 1) if n % d == 0]
    fits = [d for d in divisors if d * plane_bytes <= budget_bytes] or [1]
    tn = max(fits)
    if prefer_even_steps:
        even = [d for d in fits if (n // d) >= 2 and (n // d) % 2 == 0]
        if even:
            tn = max(even)
    elif n // tn < 2:
        multi = [d for d in fits if n // d >= 2]
        if multi:
            tn = max(multi)
    return tn


def _make_kernel(tn: int, w_first: bool, cdt):
    def kernel(x_ref, ah_ref, awt_ref, o_ref, t_ref):
        # x_ref:   (TN, H, W)       full (uncropped) f32 image planes
        # ah_ref:  (Ho_p, H)        row weights   (crop folded in, zero-padded), cdt
        # awt_ref: (W, Wo_p)        column weights (crop folded in, zero-padded), cdt
        # o_ref:   (TN, Ho_p, Wo_p) f32 output
        # t_ref:   (TN, rows, cols) f32 scratch for the per-plane intermediate
        ah = ah_ref[...]
        awt = awt_ref[...]

        def body(i, carry):
            # In-kernel cast to the MXU compute dtype (hidden under the DMA).
            xi = x_ref[i].astype(cdt)
            if w_first:
                # (H, W) @ (W, Wo_p) -> f32 scratch, then (Ho_p, H) @ (H, Wo_p)
                t_ref[i] = jnp.dot(xi, awt, preferred_element_type=jnp.float32)
                o_ref[i] = jnp.dot(ah, t_ref[i].astype(cdt),
                                   preferred_element_type=jnp.float32)
            else:
                # (Ho_p, H) @ (H, W) -> f32 scratch, then (Ho_p, W) @ (W, Wo_p)
                t_ref[i] = jnp.dot(ah, xi, preferred_element_type=jnp.float32)
                o_ref[i] = jnp.dot(t_ref[i].astype(cdt), awt,
                                   preferred_element_type=jnp.float32)
            return carry

        # fori_loop(unroll=True) bounds live ranges while keeping scheduler
        # visibility (vs. a static Python loop that bloats bundles as TN grows).
        lax.fori_loop(0, tn, body, 0, unroll=True)

    return kernel


def resize_and_crop(image, target_crop, target_size, *, use_bf16: bool = True):
    """image: (B, C, H, W) float32. target_crop: [left, upper, right, lower] or None.
    target_size: (width, height). Returns (B, C, height, width) float32."""
    B, C, H, W = image.shape
    if target_crop is not None:
        left, upper, right, lower = (int(v) for v in target_crop)
    else:
        left, upper, right, lower = 0, 0, W, H
    Hc, Wc = lower - upper, right - left
    Wo, Ho = int(target_size[0]), int(target_size[1])  # PIL size = (W, H)

    if (Wc, Hc) == (Wo, Ho):
        # PIL skips the resize when the (cropped) size already matches.
        return image[:, :, upper:lower, left:right].astype(jnp.float32)

    Ho_p = _round_up(Ho, 8)      # sublane-aligned output rows
    Wo_p = _round_up(Wo, 128)    # lane-dense output columns (unmasked vst)

    # Fold the crop into the resampling matrices: columns outside the crop box
    # are zero, so the full image feeds the kernel (no XLA slice / HBM copy).
    Ah = np.zeros((Ho_p, H), np.float32)
    Ah[:Ho, upper:lower] = _pil_bilinear_weights(Hc, Ho)
    AwT = np.zeros((W, Wo_p), np.float32)
    AwT[left:right, :Wo] = _pil_bilinear_weights(Wc, Wo).T

    cdt = jnp.bfloat16 if use_bf16 else jnp.float32
    N = B * C
    # NOTE: no wrapper-side dtype cast — f32 HBM data is fed straight to the
    # kernel and cast on the VPU inside it (saves a full extra HBM pass).
    x = image.reshape(N, H, W)
    ah = jnp.asarray(Ah, dtype=cdt)
    awt = jnp.asarray(AwT, dtype=cdt)

    # Pick matmul order minimizing total MXU MACs (also shrinks the intermediate).
    w_first = Wo_p * H * (W + Ho_p) <= Ho_p * W * (H + Wo_p)
    t_rows = H if w_first else Ho_p
    t_cols = Wo_p if w_first else W

    # Generation-aware block budget / VMEM limit.
    capacity = _vmem_capacity_bytes()
    v7x_like = capacity <= (96 << 20)              # 64 MiB per-TensorCore parts
    block_budget = (11 << 20) if v7x_like else (22 << 20)

    plane_bytes = H * W * 4 + Ho_p * Wo_p * 4 + t_rows * t_cols * 4
    TN = _choose_tn(N, plane_bytes, block_budget, prefer_even_steps=v7x_like)

    w_item = 2 if use_bf16 else 4
    est = (2 * TN * H * W * 4                      # double-buffered f32 input blocks
           + 2 * TN * Ho_p * Wo_p * 4              # double-buffered f32 output blocks
           + 2 * (Ho_p * H + W * Wo_p) * w_item    # weights
           + TN * t_rows * t_cols * 4)             # f32 scratch
    cap = max(capacity - (12 << 20), 16 << 20)     # ~52 MiB cap on v7x-class parts
    vmem_limit = int(min(max(est + (4 << 20), 16 << 20), cap))
    # TODO(synk): very large planes (e.g. 4K crops on v7x's 64 MiB VMEM) still need
    # an extra "arbitrary" grid axis tiling H into row strips with pl.when-init
    # accumulation into o_ref; whole-plane blocks are used here.

    kernel = _make_kernel(TN, w_first, cdt)

    out = pl.pallas_call(
        kernel,
        out_shape=jax.ShapeDtypeStruct((N, Ho_p, Wo_p), jnp.float32),
        grid=(N // TN,),
        in_specs=[
            pl.BlockSpec((TN, H, W), lambda n: (n, 0, 0)),
            pl.BlockSpec((Ho_p, H), lambda n: (0, 0)),
            pl.BlockSpec((W, Wo_p), lambda n: (0, 0)),
        ],
        out_specs=pl.BlockSpec((TN, Ho_p, Wo_p), lambda n: (n, 0, 0)),
        scratch_shapes=[pltpu.VMEM((TN, t_rows, t_cols), jnp.float32)],
        compiler_params=pltpu.CompilerParams(
            dimension_semantics=("parallel",),
            vmem_limit_bytes=vmem_limit,
        ),
    )(x, ah, awt)

    # Depad (exact zeros) + reshape; a no-op when Ho/Wo are already aligned.
    return out[:, :Ho, :Wo].reshape(B, C, Ho, Wo)


def _reference(image, target_crop, target_size):
    """Pure-JAX f32 reference of the same separable resampling (sanity check)."""
    if target_crop is not None:
        l, u, r, b = target_crop
        image = image[:, :, u:b, l:r]
    Hc, Wc = image.shape[2], image.shape[3]
    Wo, Ho = int(target_size[0]), int(target_size[1])
    if (Wc, Hc) == (Wo, Ho):
        return image.astype(jnp.float32)
    Ah = jnp.asarray(_pil_bilinear_weights(Hc, Ho))
    Aw = jnp.asarray(_pil_bilinear_weights(Wc, Wo))
    return jnp.einsum("oh,bchw,pw->bcop", Ah, image.astype(jnp.float32), Aw)


if __name__ == "__main__":
    key = jax.random.PRNGKey(0)
    B, C, H, W = 2, 4, 16, 16
    image = jax.random.uniform(key, (B, C, H, W), dtype=jnp.float32)

    target_crop = [2, 2, 14, 14]   # PIL box: (left, upper, right, lower) -> 12x12
    target_size = (8, 8)           # PIL size: (width, height)

    ref = jax.block_until_ready(_reference(image, target_crop, target_size))

    # Default path: bf16 MXU (f32 accumulation, f32 intermediate).
    out = jax.block_until_ready(resize_and_crop(image, target_crop, target_size))
    assert out.shape == (B, C, target_size[1], target_size[0]), out.shape
    assert np.allclose(np.asarray(out), np.asarray(ref), atol=2e-2, rtol=2e-2)

    # Full-precision path: should match the exact separable resample tightly.
    out_f32 = jax.block_until_ready(
        resize_and_crop(image, target_crop, target_size, use_bf16=False))
    assert np.allclose(np.asarray(out_f32), np.asarray(ref), atol=1e-5, rtol=1e-5)

    print("KERNEL_OK")
</pallas_src>

<mosaic_0001>
module attributes {stable_mosaic.version = 11 : i64} {
  func.func @kernel(%arg0: i32, %arg1: memref<4x16x16xf32, #tpu.memory_space<vmem>>, %arg2: memref<8x16xbf16, #tpu.memory_space<vmem>>, %arg3: memref<16x128xbf16, #tpu.memory_space<vmem>>, %arg4: memref<4x8x128xf32, #tpu.memory_space<vmem>>, %arg5: memref<4x8x16xf32, #tpu.memory_space<vmem>>) attributes {dimension_semantics = [#tpu.dimension_semantics<parallel>], iteration_bounds = array<i64: 2>, scalar_prefetch = 0 : i64, scratch_operands = 1 : i64, tpu.core_type = #tpu.core_type<tc>, window_params = [{transform_indices = @transform_0, window_bounds = array<i64: 4, 16, 16>}, {pipeline_mode = #tpu.pipeline_mode<synchronous>, transform_indices = @transform_1, window_bounds = array<i64: 8, 16>}, {pipeline_mode = #tpu.pipeline_mode<synchronous>, transform_indices = @transform_2, window_bounds = array<i64: 16, 128>}, {transform_indices = @transform_3, window_bounds = array<i64: 4, 8, 128>}]} {
    %c0 = arith.constant 0 : index
    %c0_0 = arith.constant 0 : index
    %0 = vector.load %arg2[%c0, %c0_0] : memref<8x16xbf16, #tpu.memory_space<vmem>>, vector<8x16xbf16>
    %c0_1 = arith.constant 0 : index
    %c0_2 = arith.constant 0 : index
    %1 = vector.load %arg3[%c0_1, %c0_2] : memref<16x128xbf16, #tpu.memory_space<vmem>>, vector<16x128xbf16>
    %c0_i32 = arith.constant 0 : i32
    %2 = arith.index_cast %c0_i32 : i32 to index
    %c0_3 = arith.constant 0 : index
    %c0_4 = arith.constant 0 : index
    %3 = vector.load %arg1[%2, %c0_3, %c0_4] : memref<4x16x16xf32, #tpu.memory_space<vmem>>, vector<1x16x16xf32>
    %4 = vector.shape_cast %3 : vector<1x16x16xf32> to vector<16x16xf32>
    %5 = arith.truncf %4 : vector<16x16xf32> to vector<16x16xbf16>
    %cst = arith.constant dense<0.000000e+00> : vector<8x16xf32>
    %6 = tpu.matmul %0, %5, %cst {dimension_numbers = #tpu.dot_dimension_numbers<[1], [0], [0], [1], [0, 0, 1, 1], [], []>} : vector<8x16xbf16>, vector<16x16xbf16>, vector<8x16xf32> -> vector<8x16xf32>
    %7 = arith.index_cast %c0_i32 : i32 to index
    %c0_5 = arith.constant 0 : index
    %c0_6 = arith.constant 0 : index
    %8 = vector.load %arg5[%7, %c0_5, %c0_6] : memref<4x8x16xf32, #tpu.memory_space<vmem>>, vector<1x8x16xf32>
    %9 = vector.shape_cast %8 : vector<1x8x16xf32> to vector<8x16xf32>
    %10 = vector.shape_cast %6 : vector<8x16xf32> to vector<1x8x16xf32>
    tpu.vector_store %arg5[%7, %c0_5, %c0_6], %10 {strides = array<i32>} : memref<4x8x16xf32, #tpu.memory_space<vmem>>, vector<1x8x16xf32>,
    %11 = arith.index_cast %c0_i32 : i32 to index
    %c0_7 = arith.constant 0 : index
    %c0_8 = arith.constant 0 : index
    %12 = vector.load %arg5[%11, %c0_7, %c0_8] : memref<4x8x16xf32, #tpu.memory_space<vmem>>, vector<1x8x16xf32>
    %13 = vector.shape_cast %12 : vector<1x8x16xf32> to vector<8x16xf32>
    %14 = arith.truncf %13 : vector<8x16xf32> to vector<8x16xbf16>
    %cst_9 = arith.constant dense<0.000000e+00> : vector<8x128xf32>
    %15 = tpu.matmul %14, %1, %cst_9 {dimension_numbers = #tpu.dot_dimension_numbers<[1], [0], [0], [1], [0, 0, 1, 1], [], []>} : vector<8x16xbf16>, vector<16x128xbf16>, vector<8x128xf32> -> vector<8x128xf32>
    %16 = arith.index_cast %c0_i32 : i32 to index
    %c0_10 = arith.constant 0 : index
    %c0_11 = arith.constant 0 : index
    %17 = vector.load %arg4[%16, %c0_10, %c0_11] : memref<4x8x128xf32, #tpu.memory_space<vmem>>, vector<1x8x128xf32>
    %18 = vector.shape_cast %17 : vector<1x8x128xf32> to vector<8x128xf32>
    %19 = vector.shape_cast %15 : vector<8x128xf32> to vector<1x8x128xf32>
    tpu.vector_store %arg4[%16, %c0_10, %c0_11], %19 {strides = array<i32>} : memref<4x8x128xf32, #tpu.memory_space<vmem>>, vector<1x8x128xf32>,
    %c1_i32 = arith.constant 1 : i32
    %20 = arith.index_cast %c1_i32 : i32 to index
    %c0_12 = arith.constant 0 : index
    %c0_13 = arith.constant 0 : index
    %21 = vector.load %arg1[%20, %c0_12, %c0_13] : memref<4x16x16xf32, #tpu.memory_space<vmem>>, vector<1x16x16xf32>
    %22 = vector.shape_cast %21 : vector<1x16x16xf32> to vector<16x16xf32>
    %23 = arith.truncf %22 : vector<16x16xf32> to vector<16x16xbf16>
    %cst_14 = arith.constant dense<0.000000e+00> : vector<8x16xf32>
    %24 = tpu.matmul %0, %23, %cst_14 {dimension_numbers = #tpu.dot_dimension_numbers<[1], [0], [0], [1], [0, 0, 1, 1], [], []>} : vector<8x16xbf16>, vector<16x16xbf16>, vector<8x16xf32> -> vector<8x16xf32>
    %25 = arith.index_cast %c1_i32 : i32 to index
    %c0_15 = arith.constant 0 : index
    %c0_16 = arith.constant 0 : index
    %26 = vector.load %arg5[%25, %c0_15, %c0_16] : memref<4x8x16xf32, #tpu.memory_space<vmem>>, vector<1x8x16xf32>
    %27 = vector.shape_cast %26 : vector<1x8x16xf32> to vector<8x16xf32>
    %28 = vector.shape_cast %24 : vector<8x16xf32> to vector<1x8x16xf32>
    tpu.vector_store %arg5[%25, %c0_15, %c0_16], %28 {strides = array<i32>} : memref<4x8x16xf32, #tpu.memory_space<vmem>>, vector<1x8x16xf32>,
    %29 = arith.index_cast %c1_i32 : i32 to index
    %c0_17 = arith.constant 0 : index
    %c0_18 = arith.constant 0 : index
    %30 = vector.load %arg5[%29, %c0_17, %c0_18] : memref<4x8x16xf32, #tpu.memory_space<vmem>>, vector<1x8x16xf32>
    %31 = vector.shape_cast %30 : vector<1x8x16xf32> to vector<8x16xf32>
    %32 = arith.truncf %31 : vector<8x16xf32> to vector<8x16xbf16>
    %cst_19 = arith.constant dense<0.000000e+00> : vector<8x128xf32>
    %33 = tpu.matmul %32, %1, %cst_19 {dimension_numbers = #tpu.dot_dimension_numbers<[1], [0], [0], [1], [0, 0, 1, 1], [], []>} : vector<8x16xbf16>, vector<16x128xbf16>, vector<8x128xf32> -> vector<8x128xf32>
    %34 = arith.index_cast %c1_i32 : i32 to index
    %c0_20 = arith.constant 0 : index
    %c0_21 = arith.constant 0 : index
    %35 = vector.load %arg4[%34, %c0_20, %c0_21] : memref<4x8x128xf32, #tpu.memory_space<vmem>>, vector<1x8x128xf32>
    %36 = vector.shape_cast %35 : vector<1x8x128xf32> to vector<8x128xf32>
    %37 = vector.shape_cast %33 : vector<8x128xf32> to vector<1x8x128xf32>
    tpu.vector_store %arg4[%34, %c0_20, %c0_21], %37 {strides = array<i32>} : memref<4x8x128xf32, #tpu.memory_space<vmem>>, vector<1x8x128xf32>,
    %c2_i32 = arith.constant 2 : i32
    %38 = arith.index_cast %c2_i32 : i32 to index
    %c0_22 = arith.constant 0 : index
    %c0_23 = arith.constant 0 : index
    %39 = vector.load %arg1[%38, %c0_22, %c0_23] : memref<4x16x16xf32, #tpu.memory_space<vmem>>, vector<1x16x16xf32>
    %40 = vector.shape_cast %39 : vector<1x16x16xf32> to vector<16x16xf32>
    %41 = arith.truncf %40 : vector<16x16xf32> to vector<16x16xbf16>
    %cst_24 = arith.constant dense<0.000000e+00> : vector<8x16xf32>
    %42 = tpu.matmul %0, %41, %cst_24 {dimension_numbers = #tpu.dot_dimension_numbers<[1], [0], [0], [1], [0, 0, 1, 1], [], []>} : vector<8x16xbf16>, vector<16x16xbf16>, vector<8x16xf32> -> vector<8x16xf32>
    %43 = arith.index_cast %c2_i32 : i32 to index
    %c0_25 = arith.constant 0 : index
    %c0_26 = arith.constant 0 : index
    %44 = vector.load %arg5[%43, %c0_25, %c0_26] : memref<4x8x16xf32, #tpu.memory_space<vmem>>, vector<1x8x16xf32>
    %45 = vector.shape_cast %44 : vector<1x8x16xf32> to vector<8x16xf32>
    %46 = vector.shape_cast %42 : vector<8x16xf32> to vector<1x8x16xf32>
    tpu.vector_store %arg5[%43, %c0_25, %c0_26], %46 {strides = array<i32>} : memref<4x8x16xf32, #tpu.memory_space<vmem>>, vector<1x8x16xf32>,
    %47 = arith.index_cast %c2_i32 : i32 to index
    %c0_27 = arith.constant 0 : index
    %c0_28 = arith.constant 0 : index
    %48 = vector.load %arg5[%47, %c0_27, %c0_28] : memref<4x8x16xf32, #tpu.memory_space<vmem>>, vector<1x8x16xf32>
    %49 = vector.shape_cast %48 : vector<1x8x16xf32> to vector<8x16xf32>
    %50 = arith.truncf %49 : vector<8x16xf32> to vector<8x16xbf16>
    %cst_29 = arith.constant dense<0.000000e+00> : vector<8x128xf32>
    %51 = tpu.matmul %50, %1, %cst_29 {dimension_numbers = #tpu.dot_dimension_numbers<[1], [0], [0], [1], [0, 0, 1, 1], [], []>} : vector<8x16xbf16>, vector<16x128xbf16>, vector<8x128xf32> -> vector<8x128xf32>
    %52 = arith.index_cast %c2_i32 : i32 to index
    %c0_30 = arith.constant 0 : index
    %c0_31 = arith.constant 0 : index
    %53 = vector.load %arg4[%52, %c0_30, %c0_31] : memref<4x8x128xf32, #tpu.memory_space<vmem>>, vector<1x8x128xf32>
    %54 = vector.shape_cast %53 : vector<1x8x128xf32> to vector<8x128xf32>
    %55 = vector.shape_cast %51 : vector<8x128xf32> to vector<1x8x128xf32>
    tpu.vector_store %arg4[%52, %c0_30, %c0_31], %55 {strides = array<i32>} : memref<4x8x128xf32, #tpu.memory_space<vmem>>, vector<1x8x128xf32>,
    %c3_i32 = arith.constant 3 : i32
    %56 = arith.index_cast %c3_i32 : i32 to index
    %c0_32 = arith.constant 0 : index
    %c0_33 = arith.constant 0 : index
    %57 = vector.load %arg1[%56, %c0_32, %c0_33] : memref<4x16x16xf32, #tpu.memory_space<vmem>>, vector<1x16x16xf32>
    %58 = vector.shape_cast %57 : vector<1x16x16xf32> to vector<16x16xf32>
    %59 = arith.truncf %58 : vector<16x16xf32> to vector<16x16xbf16>
    %cst_34 = arith.constant dense<0.000000e+00> : vector<8x16xf32>
    %60 = tpu.matmul %0, %59, %cst_34 {dimension_numbers = #tpu.dot_dimension_numbers<[1], [0], [0], [1], [0, 0, 1, 1], [], []>} : vector<8x16xbf16>, vector<16x16xbf16>, vector<8x16xf32> -> vector<8x16xf32>
    %61 = arith.index_cast %c3_i32 : i32 to index
    %c0_35 = arith.constant 0 : index
    %c0_36 = arith.constant 0 : index
    %62 = vector.load %arg5[%61, %c0_35, %c0_36] : memref<4x8x16xf32, #tpu.memory_space<vmem>>, vector<1x8x16xf32>
    %63 = vector.shape_cast %62 : vector<1x8x16xf32> to vector<8x16xf32>
    %64 = vector.shape_cast %60 : vector<8x16xf32> to vector<1x8x16xf32>
    tpu.vector_store %arg5[%61, %c0_35, %c0_36], %64 {strides = array<i32>} : memref<4x8x16xf32, #tpu.memory_space<vmem>>, vector<1x8x16xf32>,
    %65 = arith.index_cast %c3_i32 : i32 to index
    %c0_37 = arith.constant 0 : index
    %c0_38 = arith.constant 0 : index
    %66 = vector.load %arg5[%65, %c0_37, %c0_38] : memref<4x8x16xf32, #tpu.memory_space<vmem>>, vector<1x8x16xf32>
    %67 = vector.shape_cast %66 : vector<1x8x16xf32> to vector<8x16xf32>
    %68 = arith.truncf %67 : vector<8x16xf32> to vector<8x16xbf16>
    %cst_39 = arith.constant dense<0.000000e+00> : vector<8x128xf32>
    %69 = tpu.matmul %68, %1, %cst_39 {dimension_numbers = #tpu.dot_dimension_numbers<[1], [0], [0], [1], [0, 0, 1, 1], [], []>} : vector<8x16xbf16>, vector<16x128xbf16>, vector<8x128xf32> -> vector<8x128xf32>
    %70 = arith.index_cast %c3_i32 : i32 to index
    %c0_40 = arith.constant 0 : index
    %c0_41 = arith.constant 0 : index
    %71 = vector.load %arg4[%70, %c0_40, %c0_41] : memref<4x8x128xf32, #tpu.memory_space<vmem>>, vector<1x8x128xf32>
    %72 = vector.shape_cast %71 : vector<1x8x128xf32> to vector<8x128xf32>
    %73 = vector.shape_cast %69 : vector<8x128xf32> to vector<1x8x128xf32>
    tpu.vector_store %arg4[%70, %c0_40, %c0_41], %73 {strides = array<i32>} : memref<4x8x128xf32, #tpu.memory_space<vmem>>, vector<1x8x128xf32>,
    %c4_i32 = arith.constant 4 : i32
    return
  }
  func.func @transform_0(%arg0: i32) -> (i32, i32, i32) {
    %c0_i32 = arith.constant 0 : i32
    %c0_i32_0 = arith.constant 0 : i32
    %c0_i32_1 = arith.constant 0 : i32
    return %arg0, %c0_i32, %c0_i32_0 : i32, i32, i32
  }
  func.func @transform_1(%arg0: i32) -> (i32, i32) {
    %c0_i32 = arith.constant 0 : i32
    %c0_i32_0 = arith.constant 0 : i32
    %c0_i32_1 = arith.constant 0 : i32
    return %c0_i32, %c0_i32_0 : i32, i32
  }
  func.func @transform_2(%arg0: i32) -> (i32, i32) {
    %c0_i32 = arith.constant 0 : i32
    %c0_i32_0 = arith.constant 0 : i32
    %c0_i32_1 = arith.constant 0 : i32
    return %c0_i32, %c0_i32_0 : i32, i32
  }
  func.func @transform_3(%arg0: i32) -> (i32, i32, i32) {
    %c0_i32 = arith.constant 0 : i32
    %c0_i32_0 = arith.constant 0 : i32
    %c0_i32_1 = arith.constant 0 : i32
    return %arg0, %c0_i32, %c0_i32_0 : i32, i32, i32
  }
}

</mosaic_0001>

<llo_original>
// kernel: tpu_custom_call.1
$region0: #{tpu_custom_call.1}
  #allocation0 [shape = 'u32[]', space=smem, size = 0x4, offset = 0x4, fixed_abs, tag = 'smem constant byte address 0x4 - core index']
  #allocation1 [shape = 'u32[144,128]{1,0:T(1,128)}', space=vmem, size = 0x12000, scoped, tag = 'internal scratch']
  #allocation2 [shape = 'f32[4,8,16]{2,1,0:T(8,128)}', space=vmem, size = 0x4000, scoped, tag = 'scratch operand']
  %s0 = inlined_call_operand.hbm [shape: f32[8,16,16], index: 0, kind: input, shape index: {}]
  %s1 = inlined_call_operand.hbm [shape: bf16[8,16], index: 1, kind: input, shape index: {}]
  %s2 = inlined_call_operand.hbm [shape: bf16[16,128], index: 2, kind: input, shape index: {}]
  %s3 = inlined_call_operand.hbm [shape: f32[8,8,128], index: 3, kind: output, shape index: {}]
  %s4 = sld [smem:[#allocation0]]
  $region57: #{tpu_custom_call.1} parent=0
    _
  %s6 = ssub.s32 1, %s4
  %s7 = scalar_select 0, %s6, %s4
  $region1: #{tpu_custom_call.1} parent=0
    #allocation3 [shape = 'u8[65536]{0}', space=vmem, size = 0x10000, scoped, tag = 'input window, operand 0']
    #allocation4 [shape = 's32[2]{0}', space=sflag, size = 0x8, scoped, tag = 'scoped memory for tpu_custom_call.1']
    #allocation5 [shape = 's32[2]{0}', space=sflag, size = 0x8, scoped, tag = 'scoped memory for tpu_custom_call.1']
    #allocation6 [shape = 'u8[2048]{0}', space=vmem, size = 0x800, scoped, tag = 'input window, operand 1, single buffered']
    #allocation7 [shape = 's32[1]{0}', space=sflag, size = 0x4, scoped, tag = 'scoped memory for tpu_custom_call.1']
    #allocation8 [shape = 'u8[4096]{0}', space=vmem, size = 0x1000, scoped, tag = 'input window, operand 2, single buffered']
    #allocation9 [shape = 'u8[32768]{0}', space=vmem, size = 0x8000, scoped, tag = 'output window, operand 0']
    %8 = vsyncpa [#allocation4], 0
    %s9 = scalar_lea.sflag [#allocation4], 1
    %10 = vsyncpa %s9, 0
    %11 = vsyncpa [#allocation7], 0
    %12 = vsyncpa [#allocation5], 0
    %s13 = scalar_lea.sflag [#allocation5], 1
    %14 = vsyncpa %s13, 0
    loop: start=0, step=1, limit=4
    $region2: #{tpu_custom_call.1} parent=1 // loop_pre_header
      _
    $region3: #{tpu_custom_call.1} parent=1 // loop_header
      %s16 = sphi 0, %s20
      %p17 = scmp.ge.s32.totalorder %s16, 4
      %s26 = sphi 0, %s28
      %s29 = sphi 0, %s26
      %s30 = sphi 0, %s29
      %s46 = sphi 0, %s30
      %s50 = sphi 0, %s50
      %s52 = sphi 0, %s50
      %s53 = sphi 0, %s52
      %s67 = sphi 0, %s53
      %s71 = sphi 0, %s71
      %s73 = sphi 0, %s71
      %s74 = sphi 0, %s73
      %s88 = sphi 0, %s74
      %s94 = sphi 0, %s96
      %s97 = sphi 0, %s94
      %s98 = sphi 0, %s97
      %s114 = sphi 0, %s98
    $region4: #{tpu_custom_call.1} parent=1 // loop_header_branch
      %19 = sbr.rel (%p17) target = $region8
    $region5: #{tpu_custom_call.1} parent=1 // loop_body
      %s21 = ssub.s32 %s16, 1
      %s22 = ssub.s32 %s16, 2
      %s23 = sadd.s32 %s16, 1
      %s24 = ssub.s32 %s16, %s23
      %p25 = scmp.eq.s32.totalorder %s24, 0
      %s27 = sadd.s32 %s26, 1
      %s28 = scalar_select %p25, %s26, %s27
      %p31 = pneg %p25
      %p32 = scmp.eq.s32.totalorder %s16, 1
      %p33 = por %p31, %p32
      %p34 = scmp.ne.s32.totalorder %s26, %s29
      %p35 = scmp.eq.s32.totalorder %s16, 0
      %p36 = por %p34, %p35
      %p37 = scmp.ne.s32.totalorder %s26, %s29
      %p38 = scmp.eq.s32.totalorder %s21, 1
      %p39 = por %p37, %p38
      %p40 = scmp.ne.s32.totalorder %s29, %s30
      %p41 = scmp.eq.s32.totalorder %s21, 0
      %p42 = por %p40, %p41
      %p43 = scmp.ne.s32.totalorder %s29, %s30
      %p44 = scmp.eq.s32.totalorder %s22, 1
      %p45 = por %p43, %p44
      %p47 = scmp.ne.s32.totalorder %s30, %s46
      %p48 = scmp.eq.s32.totalorder %s22, 0
      %p49 = por %p47, %p48
      %s51 = sadd.s32 %s50, 1
      %p54 = scmp.eq.s32.totalorder %s16, 1
      %p55 = scmp.ne.s32.totalorder %s50, %s52
      %p56 = scmp.eq.s32.totalorder %s16, 0
      %p57 = por %p55, %p56
      %p58 = scmp.ne.s32.totalorder %s50, %s52
      %p59 = scmp.eq.s32.totalorder %s21, 1
      %p60 = por %p58, %p59
      %p61 = scmp.ne.s32.totalorder %s52, %s53
      %p62 = scmp.eq.s32.totalorder %s21, 0
      %p63 = por %p61, %p62
      %p64 = scmp.ne.s32.totalorder %s52, %s53
      %p65 = scmp.eq.s32.totalorder %s22, 1
      %p66 = por %p64, %p65
      %p68 = scmp.ne.s32.totalorder %s53, %s67
      %p69 = scmp.eq.s32.totalorder %s22, 0
      %p70 = por %p68, %p69
      %s72 = sadd.s32 %s71, 1
      %p75 = scmp.eq.s32.totalorder %s16, 1
      %p76 = scmp.ne.s32.totalorder %s71, %s73
      %p77 = scmp.eq.s32.totalorder %s16, 0
      %p78 = por %p76, %p77
      %p79 = scmp.ne.s32.totalorder %s71, %s73
      %p80 = scmp.eq.s32.totalorder %s21, 1
      %p81 = por %p79, %p80
      %p82 = scmp.ne.s32.totalorder %s73, %s74
      %p83 = scmp.eq.s32.totalorder %s21, 0
      %p84 = por %p82, %p83
      %p85 = scmp.ne.s32.totalorder %s73, %s74
      %p86 = scmp.eq.s32.totalorder %s22, 1
      %p87 = por %p85, %p86
      %p89 = scmp.ne.s32.totalorder %s74, %s88
      %p90 = scmp.eq.s32.totalorder %s22, 0
      %p91 = por %p89, %p90
      %s92 = ssub.s32 %s16, %s23
      %p93 = scmp.eq.s32.totalorder %s92, 0
      %s95 = sadd.s32 %s94, 1
      %s96 = scalar_select %p93, %s94, %s95
      %p99 = pneg %p93
      %p100 = scmp.eq.s32.totalorder %s16, 1
      %p101 = por %p99, %p100
      %p102 = scmp.ne.s32.totalorder %s94, %s97
      %p103 = scmp.eq.s32.totalorder %s16, 0
      %p104 = por %p102, %p103
      %p105 = scmp.ne.s32.totalorder %s94, %s97
      %p106 = scmp.eq.s32.totalorder %s21, 1
      %p107 = por %p105, %p106
      %p108 = scmp.ne.s32.totalorder %s97, %s98
      %p109 = scmp.eq.s32.totalorder %s21, 0
      %p110 = por %p108, %p109
      %p111 = scmp.ne.s32.totalorder %s97, %s98
      %p112 = scmp.eq.s32.totalorder %s22, 1
      %p113 = por %p111, %p112
      %p115 = scmp.ne.s32.totalorder %s98, %s114
      %p116 = scmp.eq.s32.totalorder %s22, 0
      %p117 = por %p115, %p116
      %p118 = scmp.le.s32.totalorder 1, %s16
      %p119 = scmp.lt.s32.totalorder %s16, 3
      %p120 = pnand %p118, %p119
      %p121 = pneg %p120
      // Predicated region
      $region9: #{tpu_custom_call.1} parent=5 // pred_check
        _
      $region10: #{tpu_custom_call.1} parent=5 // pred_check_branch
        %123 = sbr.rel (%p120) target = $region12
      $region11: #{tpu_custom_call.1} parent=5 // pred_region
        %s124 = ssub.s32 %s16, 1
        // Predicated region
        $region13: #{tpu_custom_call.1} parent=11 // pred_check
          %p125 = pneg %p63
        $region14: #{tpu_custom_call.1} parent=11 // pred_check_branch
          %127 = sbr.rel (%p125) target = $region16
        $region15: #{tpu_custom_call.1} parent=11 // pred_region
          %s129 = ssub.s32 64, 64
          %130 = vsyncadd [#allocation7], %s129
          %s132 = sshll.u32 [#allocation6], 4
          %s133 = int_to_ptr.vmem [resolvable:$true] %s132
          %135 = dma.hbm_to_vmem [thread:$0]  %s1, 64, %s133, [#allocation7]
        $region16: #{tpu_custom_call.1} parent=11 // pred_fallthru
          _
        // Predicated region
        $region17: #{tpu_custom_call.1} parent=11 // pred_check
          %p136 = pneg %p84
        $region18: #{tpu_custom_call.1} parent=11 // pred_check_branch
          %138 = sbr.rel (%p136) target = $region20
        $region19: #{tpu_custom_call.1} parent=11 // pred_region
          %s140 = ssub.s32 128, 128
          %141 = vsyncadd [#allocation7], %s140
          %s142 = sshll.u32 [#allocation8], 4
          %s143 = int_to_ptr.vmem [resolvable:$true] %s142
          %148 = dma.hbm_to_vmem [thread:$0]  %s2, 128, %s143, [#allocation7], 64, 64, 4
        $region20: #{tpu_custom_call.1} parent=11 // pred_fallthru
          _
      $region12: #{tpu_custom_call.1} parent=5 // pred_fallthru
        _
      %p149 = scmp.lt.s32.totalorder %s16, 2
      // Predicated region
      $region21: #{tpu_custom_call.1} parent=5 // pred_check
        %p150 = pneg %p149
      $region22: #{tpu_custom_call.1} parent=5 // pred_check_branch
        %152 = sbr.rel (%p150) target = $region24
      $region23: #{tpu_custom_call.1} parent=5 // pred_region
        // Predicated region
        $region25: #{tpu_custom_call.1} parent=23 // pred_check
          %p153 = pneg %p36
        $region26: #{tpu_custom_call.1} parent=23 // pred_check_branch
          %155 = sbr.rel (%p153) target = $region28
        $region27: #{tpu_custom_call.1} parent=23 // pred_region
          %s156 = sand.u32 %s26, 1
          %s157 = scalar_lea.sflag [#allocation4], %s156
          %s158 = sand.u32 %s26, 1
          %s159 = smul.addr %s158, 64
          %s160 = scalar_lea.vmem [#allocation3], %s159
          %s161 = smul.u32 4, %s16
          %s163 = ssub.s32 1024, 1024
          %164 = vsyncadd %s157, %s163
          %s165 = smul.addr %s161, 2
          %s166 = smul.addr %s165, 128
          %s167 = scalar_lea.hbm %s0, %s166
          %s168 = sshll.u32 %s160, 4
          %s169 = int_to_ptr.vmem [resolvable:$true] %s168
          %174 = dma.hbm_to_vmem [thread:$0]  %s167, 1024, %s169, %s157, 128, 128, 8
        $region28: #{tpu_custom_call.1} parent=23 // pred_fallthru
          _
      $region24: #{tpu_custom_call.1} parent=5 // pred_fallthru
        _
      %p175 = scmp.le.s32.totalorder 1, %s16
      %p176 = scmp.lt.s32.totalorder %s16, 3
      %p177 = pnand %p175, %p176
      %p178 = pneg %p177
      // Predicated region
      $region29: #{tpu_custom_call.1} parent=5 // pred_check
        _
      $region30: #{tpu_custom_call.1} parent=5 // pred_check_branch
        %180 = sbr.rel (%p177) target = $region32
      $region31: #{tpu_custom_call.1} parent=5 // pred_region
        %s181 = ssub.s32 %s16, 1
        %s182 = sand.u32 %s29, 1
        %s183 = scalar_lea.sflag [#allocation4], %s182
        %s184 = sand.u32 %s29, 1
        %s185 = smul.addr %s184, 64
        %s186 = scalar_lea.vmem [#allocation3], %s185
        // Predicated region
        $region33: #{tpu_custom_call.1} parent=31 // pred_check
          %p187 = pneg %p42
        $region34: #{tpu_custom_call.1} parent=31 // pred_check_branch
          %189 = sbr.rel (%p187) target = $region36
        $region35: #{tpu_custom_call.1} parent=31 // pred_region
          %190 = dma.done %s183, 1024
        $region36: #{tpu_custom_call.1} parent=31 // pred_fallthru
          _
        // Predicated region
        $region37: #{tpu_custom_call.1} parent=31 // pred_check
          %p191 = pneg %p63
        $region38: #{tpu_custom_call.1} parent=31 // pred_check_branch
          %193 = sbr.rel (%p191) target = $region40
        $region39: #{tpu_custom_call.1} parent=31 // pred_region
          %194 = dma.done [#allocation7], 64
        $region40: #{tpu_custom_call.1} parent=31 // pred_fallthru
          _
        // Predicated region
        $region41: #{tpu_custom_call.1} parent=31 // pred_check
          %p195 = pneg %p84
        $region42: #{tpu_custom_call.1} parent=31 // pred_check_branch
          %197 = sbr.rel (%p195) target = $region44
        $region43: #{tpu_custom_call.1} parent=31 // pred_region
          %198 = dma.done [#allocation7], 128
        $region44: #{tpu_custom_call.1} parent=31 // pred_fallthru
          _
        %s199 = sand.u32 %s29, 1
        %s200 = scalar_lea.sflag [#allocation4], %s199
        %s201 = sand.u32 %s29, 1
        %s202 = smul.addr %s201, 64
        %s203 = scalar_lea.vmem [#allocation3], %s202
        %p204 = pneg %p42
        %p205 = pneg %p39
        %p206 = pneg %p63
        %p207 = pneg %p60
        %p208 = pneg %p84
        %p209 = pneg %p81
        %p210 = pneg %p110
        %p211 = pneg %p107
        %s212 = sand.u32 %s97, 1
        %s213 = scalar_lea.sflag [#allocation5], %s212
        %s214 = sand.u32 %s97, 1
        %s215 = smul.addr %s214, 32
        %s216 = scalar_lea.vmem [#allocation9], %s215
        %s217 = smul.u32 4, %s21
        %s218 = smul.u32 4, %s21
        %v220 = vld [vmem:[#allocation6] sm:$0xf]
        %v221 = vld [vmem:[#allocation8] sm:$0xf]
        %v222 = vld [vmem:[#allocation8 + $0x4] sm:$0xf]
        %v223 = vld [vmem:[%s186] sm:$0xff]
        %v224 = vld [vmem:[%s186 + $0x8] sm:$0xff]
        %v225 = vpack.c.bf16 %v224, %v223
        %vm226 = vcmask 130048
        %v228 = vsel %vm226, %v220, 0
        %230 = vmatprep.subr.bf16.mxu0 0
        %231 = vmatpush1.bf16.msra.mxu0 0
        %232 = vmatprep.subr.bf16.mxu0 0
        %233 = vmatpush1.bf16.msra.mxu0 0
        %234 = vmatprep.subr.bf16.mxu0 0
        %235 = vmatpush1.bf16.msra.mxu0 0
        %236 = vmatprep.subr.bf16.mxu0 0
        %237 = vmatpush1.bf16.msra.mxu0 0
        %238 = vmatprep.subr.bf16.mxu0 0
        %239 = vmatpush1.bf16.msra.mxu0 0
        %240 = vmatprep.subr.bf16.mxu0 0
        %241 = vmatpush1.bf16.msra.mxu0 0
        %242 = vmatprep.subr.bf16.mxu0 0
        %243 = vmatpush1.bf16.msra.mxu0 0
        %244 = vmatprep.subr.bf16.mxu0 0
        %245 = vmatpush1.bf16.msra.mxu0 %v225
        %246 = vmatprep.subr.bf16.mxu0 0
        %247 = vmatpush2.bf16.msra.mxu0 0
        %248 = vmatprep.subr.bf16.mxu0 0
        %249 = vmatpush2.bf16.msra.mxu0 0
        %250 = vmatprep.subr.bf16.mxu0 0
        %251 = vmatpush2.bf16.msra.mxu0 0
        %252 = vmatprep.subr.bf16.mxu0 0
        %253 = vmatpush2.bf16.msra.mxu0 0
        %254 = vmatprep.subr.bf16.mxu0 0
        %255 = vmatpush2.bf16.msra.mxu0 0
        %256 = vmatprep.subr.bf16.mxu0 0
        %257 = vmatpush2.bf16.msra.mxu0 0
        %258 = vmatprep.subr.bf16.mxu0 0
        %259 = vmatpush2.bf16.msra.mxu0 0
        %260 = vmatprep.subr.bf16.mxu0 0
        %261 = vmatpush2.bf16.msra.mxu0 0
        %262 = vmatprep.mubr.bf16.mxu0 0
        %263 = vmatmul.mubr.bf16.gmra.mxu0 %v228
        %v264 = vpop.f32.mrf.mxu0
        %v265 = vadd.f32 0.0, %v264
        %v266 = vpop.f32.mrf.mxu0
        %v267 = vpop.f32.mrf.mxu0
        %v268 = vpop.f32.mrf.mxu0
        %269 = vdwg.mxu0
        %270 = vst.msk [vmem:[#allocation2] sm:$0xff] %vm226, %v265
        %v271 = vld [vmem:[#allocation2] sm:$0xff]
        %v272 = vpack.c.bf16 %v271, %v271
        %v275 = vunpack.c.l.b16 %v221
        %v276 = vunpack.c.l.b16 %v222
        %v277 = vpack.c.b16 %v276, %v275
        %v280 = vsel %vm226, %v272, 0
        %282 = vmatprep.subr.bf16.mxu0 0
        %283 = vmatpush1.bf16.msra.mxu0 0
        %284 = vmatprep.subr.bf16.mxu0 0
        %285 = vmatpush1.bf16.msra.mxu0 0
        %286 = vmatprep.subr.bf16.mxu0 0
        %287 = vmatpush1.bf16.msra.mxu0 0
        %288 = vmatprep.subr.bf16.mxu0 0
        %289 = vmatpush1.bf16.msra.mxu0 0
        %290 = vmatprep.subr.bf16.mxu0 0
        %291 = vmatpush1.bf16.msra.mxu0 0
        %292 = vmatprep.subr.bf16.mxu0 0
        %293 = vmatpush1.bf16.msra.mxu0 0
        %294 = vmatprep.subr.bf16.mxu0 0
        %295 = vmatpush1.bf16.msra.mxu0 0
        %296 = vmatprep.subr.bf16.mxu0 0
        %297 = vmatpush1.bf16.msra.mxu0 %v277
        %298 = vmatprep.subr.bf16.mxu0 0
        %299 = vmatpush2.bf16.msra.mxu0 0
        %300 = vmatprep.subr.bf16.mxu0 0
        %301 = vmatpush2.bf16.msra.mxu0 0
        %302 = vmatprep.subr.bf16.mxu0 0
        %303 = vmatpush2.bf16.msra.mxu0 0
        %304 = vmatprep.subr.bf16.mxu0 0
        %305 = vmatpush2.bf16.msra.mxu0 0
        %306 = vmatprep.subr.bf16.mxu0 0
        %307 = vmatpush2.bf16.msra.mxu0 0
        %308 = vmatprep.subr.bf16.mxu0 0
        %309 = vmatpush2.bf16.msra.mxu0 0
        %310 = vmatprep.subr.bf16.mxu0 0
        %311 = vmatpush2.bf16.msra.mxu0 0
        %312 = vmatprep.subr.bf16.mxu0 0
        %313 = vmatpush2.bf16.msra.mxu0 0
        %314 = vmatprep.mubr.bf16.mxu0 0
        %315 = vmatmul.mubr.bf16.gmra.mxu0 %v280
        %v316 = vpop.f32.mrf.mxu0
        %v317 = vadd.f32 0.0, %v316
        %v318 = vpop.f32.mrf.mxu0
        %v319 = vpop.f32.mrf.mxu0
        %v320 = vpop.f32.mrf.mxu0
        %321 = vdwg.mxu0
        %322 = vst [vmem:[%s216] sm:$0xff] %v317
        %s323 = scalar_lea.vmem %s186, 16 [#allocation3]
        %v324 = vld [vmem:[%s323] sm:$0xff]
        %v325 = vld [vmem:[%s323 + $0x8] sm:$0xff]
        %v326 = vpack.c.bf16 %v325, %v324
        %327 = vmatprep.subr.bf16.mxu0 0
        %328 = vmatpush1.bf16.msra.mxu0 0
        %329 = vmatprep.subr.bf16.mxu0 0
        %330 = vmatpush1.bf16.msra.mxu0 0
        %331 = vmatprep.subr.bf16.mxu0 0
        %332 = vmatpush1.bf16.msra.mxu0 0
        %333 = vmatprep.subr.bf16.mxu0 0
        %334 = vmatpush1.bf16.msra.mxu0 0
        %335 = vmatprep.subr.bf16.mxu0 0
        %336 = vmatpush1.bf16.msra.mxu0 0
        %337 = vmatprep.subr.bf16.mxu0 0
        %338 = vmatpush1.bf16.msra.mxu0 0
        %339 = vmatprep.subr.bf16.mxu0 0
        %340 = vmatpush1.bf16.msra.mxu0 0
        %341 = vmatprep.subr.bf16.mxu0 0
        %342 = vmatpush1.bf16.msra.mxu0 %v326
        %343 = vmatprep.subr.bf16.mxu0 0
        %344 = vmatpush2.bf16.msra.mxu0 0
        %345 = vmatprep.subr.bf16.mxu0 0
        %346 = vmatpush2.bf16.msra.mxu0 0
        %347 = vmatprep.subr.bf16.mxu0 0
        %348 = vmatpush2.bf16.msra.mxu0 0
        %349 = vmatprep.subr.bf16.mxu0 0
        %350 = vmatpush2.bf16.msra.mxu0 0
        %351 = vmatprep.subr.bf16.mxu0 0
        %352 = vmatpush2.bf16.msra.mxu0 0
        %353 = vmatprep.subr.bf16.mxu0 0
        %354 = vmatpush2.bf16.msra.mxu0 0
        %355 = vmatprep.subr.bf16.mxu0 0
        %356 = vmatpush2.bf16.msra.mxu0 0
        %357 = vmatprep.subr.bf16.mxu0 0
        %358 = vmatpush2.bf16.msra.mxu0 0
        %359 = vmatprep.mubr.bf16.mxu0 0
        %360 = vmatmul.mubr.bf16.gmra.mxu0 %v228
        %v361 = vpop.f32.mrf.mxu0
        %v362 = vadd.f32 0.0, %v361
        %v363 = vpop.f32.mrf.mxu0
        %v364 = vpop.f32.mrf.mxu0
        %v365 = vpop.f32.mrf.mxu0
        %366 = vdwg.mxu0
        %s367 = scalar_lea.vmem [#allocation2], 8
        %368 = vst.msk [vmem:[%s367] sm:$0xff] %vm226, %v362
        %v369 = vld [vmem:[%s367] sm:$0xff]
        %v370 = vpack.c.bf16 %v369, %v369
        %v372 = vsel %vm226, %v370, 0
        %374 = vmatprep.subr.bf16.mxu0 0
        %375 = vmatpush1.bf16.msra.mxu0 0
        %376 = vmatprep.subr.bf16.mxu0 0
        %377 = vmatpush1.bf16.msra.mxu0 0
        %378 = vmatprep.subr.bf16.mxu0 0
        %379 = vmatpush1.bf16.msra.mxu0 0
        %380 = vmatprep.subr.bf16.mxu0 0
        %381 = vmatpush1.bf16.msra.mxu0 0
        %382 = vmatprep.subr.bf16.mxu0 0
        %383 = vmatpush1.bf16.msra.mxu0 0
        %384 = vmatprep.subr.bf16.mxu0 0
        %385 = vmatpush1.bf16.msra.mxu0 0
        %386 = vmatprep.subr.bf16.mxu0 0
        %387 = vmatpush1.bf16.msra.mxu0 0
        %388 = vmatprep.subr.bf16.mxu0 0
        %389 = vmatpush1.bf16.msra.mxu0 %v277
        %390 = vmatprep.subr.bf16.mxu0 0
        %391 = vmatpush2.bf16.msra.mxu0 0
        %392 = vmatprep.subr.bf16.mxu0 0
        %393 = vmatpush2.bf16.msra.mxu0 0
        %394 = vmatprep.subr.bf16.mxu0 0
        %395 = vmatpush2.bf16.msra.mxu0 0
        %396 = vmatprep.subr.bf16.mxu0 0
        %397 = vmatpush2.bf16.msra.mxu0 0
        %398 = vmatprep.subr.bf16.mxu0 0
        %399 = vmatpush2.bf16.msra.mxu0 0
        %400 = vmatprep.subr.bf16.mxu0 0
        %401 = vmatpush2.bf16.msra.mxu0 0
        %402 = vmatprep.subr.bf16.mxu0 0
        %403 = vmatpush2.bf16.msra.mxu0 0
        %404 = vmatprep.subr.bf16.mxu0 0
        %405 = vmatpush2.bf16.msra.mxu0 0
        %406 = vmatprep.mubr.bf16.mxu0 0
        %407 = vmatmul.mubr.bf16.gmra.mxu0 %v372
        %v408 = vpop.f32.mrf.mxu0
        %v409 = vadd.f32 0.0, %v408
        %v410 = vpop.f32.mrf.mxu0
        %v411 = vpop.f32.mrf.mxu0
        %v412 = vpop.f32.mrf.mxu0
        %413 = vdwg.mxu0
        %s414 = scalar_lea.vmem %s216, 8 [#allocation9]
        %415 = vst [vmem:[%s414] sm:$0xff] %v409
        %s416 = scalar_lea.vmem %s186, 32 [#allocation3]
        %v417 = vld [vmem:[%s416] sm:$0xff]
        %v418 = vld [vmem:[%s416 + $0x8] sm:$0xff]
        %v419 = vpack.c.bf16 %v418, %v417
        %420 = vmatprep.subr.bf16.mxu0 0
        %421 = vmatpush1.bf16.msra.mxu0 0
        %422 = vmatprep.subr.bf16.mxu0 0
        %423 = vmatpush1.bf16.msra.mxu0 0
        %424 = vmatprep.subr.bf16.mxu0 0
        %425 = vmatpush1.bf16.msra.mxu0 0
        %426 = vmatprep.subr.bf16.mxu0 0
        %427 = vmatpush1.bf16.msra.mxu0 0
        %428 = vmatprep.subr.bf16.mxu0 0
        %429 = vmatpush1.bf16.msra.mxu0 0
        %430 = vmatprep.subr.bf16.mxu0 0
        %431 = vmatpush1.bf16.msra.mxu0 0
        %432 = vmatprep.subr.bf16.mxu0 0
        %433 = vmatpush1.bf16.msra.mxu0 0
        %434 = vmatprep.subr.bf16.mxu0 0
        %435 = vmatpush1.bf16.msra.mxu0 %v419
        %436 = vmatprep.subr.bf16.mxu0 0
        %437 = vmatpush2.bf16.msra.mxu0 0
        %438 = vmatprep.subr.bf16.mxu0 0
        %439 = vmatpush2.bf16.msra.mxu0 0
        %440 = vmatprep.subr.bf16.mxu0 0
        %441 = vmatpush2.bf16.msra.mxu0 0
        %442 = vmatprep.subr.bf16.mxu0 0
        %443 = vmatpush2.bf16.msra.mxu0 0
        %444 = vmatprep.subr.bf16.mxu0 0
        %445 = vmatpush2.bf16.msra.mxu0 0
        %446 = vmatprep.subr.bf16.mxu0 0
        %447 = vmatpush2.bf16.msra.mxu0 0
        %448 = vmatprep.subr.bf16.mxu0 0
        %449 = vmatpush2.bf16.msra.mxu0 0
        %450 = vmatprep.subr.bf16.mxu0 0
        %451 = vmatpush2.bf16.msra.mxu0 0
        %452 = vmatprep.mubr.bf16.mxu0 0
        %453 = vmatmul.mubr.bf16.gmra.mxu0 %v228
        %v454 = vpop.f32.mrf.mxu0
        %v455 = vadd.f32 0.0, %v454
        %v456 = vpop.f32.mrf.mxu0
        %v457 = vpop.f32.mrf.mxu0
        %v458 = vpop.f32.mrf.mxu0
        %459 = vdwg.mxu0
        %s460 = scalar_lea.vmem [#allocation2], 16
        %461 = vst.msk [vmem:[%s460] sm:$0xff] %vm226, %v455
        %v462 = vld [vmem:[%s460] sm:$0xff]
        %v463 = vpack.c.bf16 %v462, %v462
        %v465 = vsel %vm226, %v463, 0
        %467 = vmatprep.subr.bf16.mxu0 0
        %468 = vmatpush1.bf16.msra.mxu0 0
        %469 = vmatprep.subr.bf16.mxu0 0
        %470 = vmatpush1.bf16.msra.mxu0 0
        %471 = vmatprep.subr.bf16.mxu0 0
        %472 = vmatpush1.bf16.msra.mxu0 0
        %473 = vmatprep.subr.bf16.mxu0 0
        %474 = vmatpush1.bf16.msra.mxu0 0
        %475 = vmatprep.subr.bf16.mxu0 0
        %476 = vmatpush1.bf16.msra.mxu0 0
        %477 = vmatprep.subr.bf16.mxu0 0
        %478 = vmatpush1.bf16.msra.mxu0 0
        %479 = vmatprep.subr.bf16.mxu0 0
        %480 = vmatpush1.bf16.msra.mxu0 0
        %481 = vmatprep.subr.bf16.mxu0 0
        %482 = vmatpush1.bf16.msra.mxu0 %v277
        %483 = vmatprep.subr.bf16.mxu0 0
        %484 = vmatpush2.bf16.msra.mxu0 0
        %485 = vmatprep.subr.bf16.mxu0 0
        %486 = vmatpush2.bf16.msra.mxu0 0
        %487 = vmatprep.subr.bf16.mxu0 0
        %488 = vmatpush2.bf16.msra.mxu0 0
        %489 = vmatprep.subr.bf16.mxu0 0
        %490 = vmatpush2.bf16.msra.mxu0 0
        %491 = vmatprep.subr.bf16.mxu0 0
        %492 = vmatpush2.bf16.msra.mxu0 0
        %493 = vmatprep.subr.bf16.mxu0 0
        %494 = vmatpush2.bf16.msra.mxu0 0
        %495 = vmatprep.subr.bf16.mxu0 0
        %496 = vmatpush2.bf16.msra.mxu0 0
        %497 = vmatprep.subr.bf16.mxu0 0
        %498 = vmatpush2.bf16.msra.mxu0 0
        %499 = vmatprep.mubr.bf16.mxu0 0
        %500 = vmatmul.mubr.bf16.gmra.mxu0 %v465
        %v501 = vpop.f32.mrf.mxu0
        %v502 = vadd.f32 0.0, %v501
        %v503 = vpop.f32.mrf.mxu0
        %v504 = vpop.f32.mrf.mxu0
        %v505 = vpop.f32.mrf.mxu0
        %506 = vdwg.mxu0
        %s507 = scalar_lea.vmem %s216, 16 [#allocation9]
        %508 = vst [vmem:[%s507] sm:$0xff] %v502
        %s509 = scalar_lea.vmem %s186, 48 [#allocation3]
        %v510 = vld [vmem:[%s509] sm:$0xff]
        %v511 = vld [vmem:[%s509 + $0x8] sm:$0xff]
        %v512 = vpack.c.bf16 %v511, %v510
        %513 = vmatprep.subr.bf16.mxu0 0
        %514 = vmatpush1.bf16.msra.mxu0 0
        %515 = vmatprep.subr.bf16.mxu0 0
        %516 = vmatpush1.bf16.msra.mxu0 0
        %517 = vmatprep.subr.bf16.mxu0 0
        %518 = vmatpush1.bf16.msra.mxu0 0
        %519 = vmatprep.subr.bf16.mxu0 0
        %520 = vmatpush1.bf16.msra.mxu0 0
        %521 = vmatprep.subr.bf16.mxu0 0
        %522 = vmatpush1.bf16.msra.mxu0 0
        %523 = vmatprep.subr.bf16.mxu0 0
        %524 = vmatpush1.bf16.msra.mxu0 0
        %525 = vmatprep.subr.bf16.mxu0 0
        %526 = vmatpush1.bf16.msra.mxu0 0
        %527 = vmatprep.subr.bf16.mxu0 0
        %528 = vmatpush1.bf16.msra.mxu0 %v512
        %529 = vmatprep.subr.bf16.mxu0 0
        %530 = vmatpush2.bf16.msra.mxu0 0
        %531 = vmatprep.subr.bf16.mxu0 0
        %532 = vmatpush2.bf16.msra.mxu0 0
        %533 = vmatprep.subr.bf16.mxu0 0
        %534 = vmatpush2.bf16.msra.mxu0 0
        %535 = vmatprep.subr.bf16.mxu0 0
        %536 = vmatpush2.bf16.msra.mxu0 0
        %537 = vmatprep.subr.bf16.mxu0 0
        %538 = vmatpush2.bf16.msra.mxu0 0
        %539 = vmatprep.subr.bf16.mxu0 0
        %540 = vmatpush2.bf16.msra.mxu0 0
        %541 = vmatprep.subr.bf16.mxu0 0
        %542 = vmatpush2.bf16.msra.mxu0 0
        %543 = vmatprep.subr.bf16.mxu0 0
        %544 = vmatpush2.bf16.msra.mxu0 0
        %545 = vmatprep.mubr.bf16.mxu0 0
        %546 = vmatmul.mubr.bf16.gmra.mxu0 %v228
        %v547 = vpop.f32.mrf.mxu0
        %v548 = vadd.f32 0.0, %v547
        %v549 = vpop.f32.mrf.mxu0
        %v550 = vpop.f32.mrf.mxu0
        %v551 = vpop.f32.mrf.mxu0
        %552 = vdwg.mxu0
        %s553 = scalar_lea.vmem [#allocation2], 24
        %554 = vst.msk [vmem:[%s553] sm:$0xff] %vm226, %v548
        %v555 = vld [vmem:[%s553] sm:$0xff]
        %v556 = vpack.c.bf16 %v555, %v555
        %v558 = vsel %vm226, %v556, 0
        %560 = vmatprep.subr.bf16.mxu0 0
        %561 = vmatpush1.bf16.msra.mxu0 0
        %562 = vmatprep.subr.bf16.mxu0 0
        %563 = vmatpush1.bf16.msra.mxu0 0
        %564 = vmatprep.subr.bf16.mxu0 0
        %565 = vmatpush1.bf16.msra.mxu0 0
        %566 = vmatprep.subr.bf16.mxu0 0
        %567 = vmatpush1.bf16.msra.mxu0 0
        %568 = vmatprep.subr.bf16.mxu0 0
        %569 = vmatpush1.bf16.msra.mxu0 0
        %570 = vmatprep.subr.bf16.mxu0 0
        %571 = vmatpush1.bf16.msra.mxu0 0
        %572 = vmatprep.subr.bf16.mxu0 0
        %573 = vmatpush1.bf16.msra.mxu0 0
        %574 = vmatprep.subr.bf16.mxu0 0
        %575 = vmatpush1.bf16.msra.mxu0 %v277
        %576 = vmatprep.subr.bf16.mxu0 0
        %577 = vmatpush2.bf16.msra.mxu0 0
        %578 = vmatprep.subr.bf16.mxu0 0
        %579 = vmatpush2.bf16.msra.mxu0 0
        %580 = vmatprep.subr.bf16.mxu0 0
        %581 = vmatpush2.bf16.msra.mxu0 0
        %582 = vmatprep.subr.bf16.mxu0 0
        %583 = vmatpush2.bf16.msra.mxu0 0
        %584 = vmatprep.subr.bf16.mxu0 0
        %585 = vmatpush2.bf16.msra.mxu0 0
        %586 = vmatprep.subr.bf16.mxu0 0
        %587 = vmatpush2.bf16.msra.mxu0 0
        %588 = vmatprep.subr.bf16.mxu0 0
        %589 = vmatpush2.bf16.msra.mxu0 0
        %590 = vmatprep.subr.bf16.mxu0 0
        %591 = vmatpush2.bf16.msra.mxu0 0
        %592 = vmatprep.mubr.bf16.mxu0 0
        %593 = vmatmul.mubr.bf16.gmra.mxu0 %v558
        %v594 = vpop.f32.mrf.mxu0
        %v595 = vadd.f32 0.0, %v594
        %v596 = vpop.f32.mrf.mxu0
        %v597 = vpop.f32.mrf.mxu0
        %v598 = vpop.f32.mrf.mxu0
        %599 = vdwg.mxu0
        %s600 = scalar_lea.vmem %s216, 24 [#allocation9]
        %601 = vst [vmem:[%s600] sm:$0xff] %v595
        %s602 = sand.u32 %s97, 1
        %s603 = scalar_lea.sflag [#allocation5], %s602
        %s604 = sand.u32 %s97, 1
        %s605 = smul.addr %s604, 32
        %s606 = scalar_lea.vmem [#allocation9], %s605
        // Predicated region
        $region45: #{tpu_custom_call.1} parent=31 // pred_check
          %p607 = pneg %p107
        $region46: #{tpu_custom_call.1} parent=31 // pred_check_branch
          %609 = sbr.rel (%p607) target = $region48
        $region47: #{tpu_custom_call.1} parent=31 // pred_region
          %s610 = smul.u32 4, %s21
          %s612 = ssub.s32 512, 512
          %613 = vsyncadd %s603, %s612
          %s614 = smul.addr %s610, 128
          %s615 = scalar_lea.hbm %s3, %s614
          %s616 = sshll.u32 %s606, 4
          %s617 = int_to_ptr.vmem [resolvable:$true] %s616
          %622 = dma.vmem_to_hbm [thread:$0]  %s617, 512, %s615, %s603, 128, 128, 8
        $region48: #{tpu_custom_call.1} parent=31 // pred_fallthru
          _
      $region32: #{tpu_custom_call.1} parent=5 // pred_fallthru
        _
      %p623 = scmp.le.s32.totalorder 2, %s16
      // Predicated region
      $region49: #{tpu_custom_call.1} parent=5 // pred_check
        %p624 = pneg %p623
      $region50: #{tpu_custom_call.1} parent=5 // pred_check_branch
        %626 = sbr.rel (%p624) target = $region52
      $region51: #{tpu_custom_call.1} parent=5 // pred_region
        %s627 = ssub.s32 %s16, 2
        // Predicated region
        $region53: #{tpu_custom_call.1} parent=51 // pred_check
          %p628 = pneg %p113
        $region54: #{tpu_custom_call.1} parent=51 // pred_check_branch
          %630 = sbr.rel (%p628) target = $region56
        $region55: #{tpu_custom_call.1} parent=51 // pred_region
          %s631 = sand.u32 %s98, 1
          %s632 = scalar_lea.sflag [#allocation5], %s631
          %s633 = sand.u32 %s98, 1
          %s634 = smul.addr %s633, 32
          %s635 = scalar_lea.vmem [#allocation9], %s634
          %636 = dma.done %s632, 512
        $region56: #{tpu_custom_call.1} parent=51 // pred_fallthru
          _
      $region52: #{tpu_custom_call.1} parent=5 // pred_fallthru
        _
    $region6: #{tpu_custom_call.1} parent=1 // loop_footer
      %s20 = sadd.s32 1, %s16
    $region7: #{tpu_custom_call.1} parent=1 // loop_footer_branch
      %15 = sbr.rel target = $region3
    $region8: #{tpu_custom_call.1} parent=1 // loop_exit
      _
    %637 = vsyncpa [#allocation4], 1
    %s638 = scalar_lea.sflag [#allocation4], 1
    %639 = vsyncpa %s638, 1
    %640 = vsyncpa [#allocation7], 1
    %641 = vsyncpa [#allocation5], 1
    %s642 = scalar_lea.sflag [#allocation5], 1
    %643 = vsyncpa %s642, 1

</llo_original>
